<compile_context>
chip_gen: v7x
topology: tpu7x:2x2x1
jax: 0.10.0
libtpu: 0.0.40
codegen_flags: <defaults>
</compile_context>

<pallas_src>
import functools

import jax
import jax.numpy as jnp
from jax import lax
from jax.experimental import pallas as pl
from jax.experimental.pallas import tpu as pltpu


def _norm_classifier_kernel(x_ref, w_ref, b_ref, o_ref, nx_ref, *, inv_temp):
    # x_ref: (TM, D); w_ref: (TN, D) native Linear layout; b_ref: (1, TN);
    # o_ref: (TM, TN); nx_ref: (TM, D) VMEM scratch (normalized x * 1/temp).

    # Normalize once per row tile (first column tile) and cache in scratch.
    # The C grid axis is "arbitrary", so the j iterations for this row tile
    # run sequentially on the same core and safely reuse the scratch.
    @pl.when(pl.program_id(1) == 0)
    def _():
        x = x_ref[...]
        xf = x.astype(jnp.float32)
        sq = jnp.sum(xf * xf, axis=-1, keepdims=True)
        # F.normalize eps: x / max(||x||, 1e-12) == x * rsqrt(max(||x||^2, 1e-24))
        inv = lax.rsqrt(jnp.maximum(sq, jnp.float32(1e-24)))      # EUP slot
        inv = inv * jnp.float32(inv_temp)     # fold 1/temp into the row scale
        # Scale in native dtype: avoids a second full (TM, D) f32 intermediate.
        nx_ref[...] = x * inv.astype(x.dtype)

    # (TM, D) x (TN, D) contracted on D  ==  norm_x @ W.T with W kept in its
    # native (C, D) layout (transposed-RHS MXU pattern, as in q @ k.T).
    out = lax.dot_general(
        nx_ref[...], w_ref[...],
        dimension_numbers=(((1,), (1,)), ((), ())),
        preferred_element_type=jnp.float32)

    # Bias pre-scaled by 1/temp on the tiny (1, TN) slice (not the full tile).
    out = out + b_ref[...].astype(jnp.float32) * jnp.float32(inv_temp)
    o_ref[...] = out.astype(o_ref.dtype)


def _round_up(v, m):
    return (v + m - 1) // m * m


def _cdiv(a, b):
    return (a + b - 1) // b


def _vmem_budget_bytes():
    """~75% of per-core VMEM, capped at 100 MiB; conservative v7x fallback."""
    cap = None
    try:
        cap = int(pltpu.get_tpu_info().vmem_capacity_bytes)
    except Exception:
        cap = None
    if not cap or cap <= 0:
        cap = 64 << 20                # v7x has the smallest per-core VMEM
    return min(cap * 3 // 4, 100 << 20)


def _footprint_bytes(tm, tn, d, in_bytes, out_bytes):
    x_blocks = 2 * tm * d * in_bytes        # double-buffered x tiles
    w_blocks = 2 * tn * d * in_bytes        # double-buffered weight tiles
    o_blocks = 2 * tm * tn * out_bytes      # double-buffered output tiles
    b_blocks = 2 * tn * 4                   # double-buffered bias slices
    nx_scratch = tm * d * in_bytes          # cached normalized x
    f32_tmp = tm * d * 4 + tm * tn * 4      # f32 upcast + f32 matmul result
    return x_blocks + w_blocks + o_blocks + b_blocks + nx_scratch + f32_tmp


def _select_tm(B, D, TN, in_bytes, out_bytes, sub, budget):
    tm_cap = _round_up(B, sub)
    for cand in (512, 384, 256, 192, 128, 64, 32, 16, 8):
        tm = min(_round_up(cand, sub), tm_cap)
        if _footprint_bytes(tm, TN, D, in_bytes, out_bytes) <= budget:
            return tm
    # TODO(synk): for very large D even an (sub, D) tile overflows the budget;
    # a K-tiled variant (grid over D, f32 accumulator scratch, pl.when
    # init/finalize, precomputed per-row inverse norms) is the right follow-up.
    return min(sub, tm_cap)


def norm_classifier(x, weight, bias, temp=1.0):
    """x: (B, D); weight: (C, D) (PyTorch Linear layout); bias: (C,) -> (B, C)."""
    B, D = x.shape
    C, D_w = weight.shape
    assert D_w == D and bias.shape == (C,)

    in_bytes = x.dtype.itemsize
    out_bytes = in_bytes                      # output follows x.dtype
    sub = 16 if x.dtype == jnp.bfloat16 else 8
    budget = _vmem_budget_bytes()

    TN = min(256, _round_up(C, 128))          # lane-dense column tile
    TM = _select_tm(B, D, TN, in_bytes, out_bytes, sub, budget)

    n_row = _cdiv(B, TM)
    n_col = _cdiv(C, TN)
    # v7x megacore: with the C axis "arbitrary", at least 2 row tiles are
    # needed so the "parallel" B axis can be split across the two cores.
    if n_row == 1 and n_col > 1 and B > sub:
        TM = _round_up(_cdiv(B, 2), sub)
        n_row = _cdiv(B, TM)

    grid = (n_row, n_col)
    b2 = bias.reshape(1, C)

    kernel = functools.partial(_norm_classifier_kernel,
                               inv_temp=1.0 / float(temp))
    return pl.pallas_call(
        kernel,
        out_shape=jax.ShapeDtypeStruct((B, C), x.dtype),
        grid_spec=pltpu.PrefetchScalarGridSpec(
            num_scalar_prefetch=0,
            grid=grid,
            in_specs=[
                pl.BlockSpec((TM, D), lambda i, j: (i, 0)),   # x rows, full D
                pl.BlockSpec((TN, D), lambda i, j: (j, 0)),   # weight (C, D)
                pl.BlockSpec((1, TN), lambda i, j: (0, j)),   # bias slice
            ],
            out_specs=pl.BlockSpec((TM, TN), lambda i, j: (i, j)),
            scratch_shapes=[pltpu.VMEM((TM, D), x.dtype)],    # cached norm_x
        ),
        compiler_params=pltpu.CompilerParams(
            dimension_semantics=("parallel", "arbitrary"),
            vmem_limit_bytes=budget,
        ),
    )(x, weight, b2)


if __name__ == "__main__":
    # Small shapes consistent with the module: input_shape=32 features,
    # num_classes=16, batch=8.
    B, D, C = 8, 32, 16
    temp = 2.0

    key = jax.random.PRNGKey(0)
    kx, kw, kb = jax.random.split(key, 3)

    x = jax.random.normal(kx, (B, D), dtype=jnp.float32)

    # Deterministic PyTorch-style Linear init: U(-1/sqrt(D), 1/sqrt(D))
    bound = 1.0 / (D ** 0.5)
    weight = jax.random.uniform(kw, (C, D), jnp.float32, -bound, bound)
    bias = jax.random.uniform(kb, (C,), jnp.float32, -bound, bound)

    out = norm_classifier(x, weight, bias, temp=temp)
    out = jax.block_until_ready(out)

    # Reference check in plain JAX.
    nrm = jnp.maximum(jnp.linalg.norm(x, axis=-1, keepdims=True), 1e-12)
    ref = ((x / nrm) @ weight.T + bias) / temp
    assert out.shape == (B, C)
    assert jnp.allclose(out, ref, atol=1e-5, rtol=1e-5), "mismatch vs reference"

    print("KERNEL_OK")
</pallas_src>

<mosaic_0001>
module attributes {stable_mosaic.version = 11 : i64} {
  func.func @_norm_classifier_kernel(%arg0: i32, %arg1: i32, %arg2: memref<8x32xf32, #tpu.memory_space<vmem>>, %arg3: memref<128x32xf32, #tpu.memory_space<vmem>>, %arg4: memref<1x128xf32, #tpu.memory_space<vmem>>, %arg5: memref<8x128xf32, #tpu.memory_space<vmem>>, %arg6: memref<8x32xf32, #tpu.memory_space<vmem>>) attributes {dimension_semantics = [#tpu.dimension_semantics<parallel>, #tpu.dimension_semantics<arbitrary>], iteration_bounds = array<i64: 1, 1>, scalar_prefetch = 0 : i64, scratch_operands = 1 : i64, tpu.core_type = #tpu.core_type<tc>, window_params = [{transform_indices = @transform_0, window_bounds = array<i64: 8, 32>}, {transform_indices = @transform_1, window_bounds = array<i64: 128, 32>}, {transform_indices = @transform_2, window_bounds = array<i64: 1, 128>}, {transform_indices = @transform_3, window_bounds = array<i64: 8, 128>}]} {
    %c0_i32 = arith.constant 0 : i32
    %0 = arith.cmpi eq, %arg1, %c0_i32 : i32
    %1 = arith.extui %0 : i1 to i32
    %c0_i32_0 = arith.constant 0 : i32
    %2 = arith.cmpi ne, %1, %c0_i32_0 : i32
    scf.if %2 {
      %c0_9 = arith.constant 0 : index
      %c0_10 = arith.constant 0 : index
      %12 = vector.load %arg2[%c0_9, %c0_10] : memref<8x32xf32, #tpu.memory_space<vmem>>, vector<8x32xf32>
      %13 = arith.mulf %12, %12 : vector<8x32xf32>
      %cst_11 = arith.constant dense<0.000000e+00> : vector<8xf32>
      %14 = vector.multi_reduction <add>, %13, %cst_11 [1] : vector<8x32xf32> to vector<8xf32>
      %15 = vector.shape_cast %14 : vector<8xf32> to vector<8x1xf32>
      %cst_12 = arith.constant 1.000000e-24 : f32
      %16 = vector.broadcast %cst_12 : f32 to vector<8x1xf32>
      %17 = arith.maximumf %15, %16 : vector<8x1xf32>
      %18 = math.rsqrt %17 : vector<8x1xf32>
      %cst_13 = arith.constant 5.000000e-01 : f32
      %19 = vector.broadcast %cst_13 : f32 to vector<8x1xf32>
      %20 = arith.mulf %18, %19 : vector<8x1xf32>
      %21 = vector.broadcast %20 : vector<8x1xf32> to vector<8x32xf32>
      %22 = arith.mulf %12, %21 : vector<8x32xf32>
      %c0_14 = arith.constant 0 : index
      %c0_15 = arith.constant 0 : index
      %23 = vector.load %arg6[%c0_14, %c0_15] : memref<8x32xf32, #tpu.memory_space<vmem>>, vector<8x32xf32>
      tpu.vector_store %arg6[%c0_14, %c0_15], %22 {strides = array<i32>} : memref<8x32xf32, #tpu.memory_space<vmem>>, vector<8x32xf32>,
    } else {
    }
    %c0 = arith.constant 0 : index
    %c0_1 = arith.constant 0 : index
    %3 = vector.load %arg6[%c0, %c0_1] : memref<8x32xf32, #tpu.memory_space<vmem>>, vector<8x32xf32>
    %c0_2 = arith.constant 0 : index
    %c0_3 = arith.constant 0 : index
    %4 = vector.load %arg3[%c0_2, %c0_3] : memref<128x32xf32, #tpu.memory_space<vmem>>, vector<128x32xf32>
    %cst = arith.constant dense<0.000000e+00> : vector<8x128xf32>
    %5 = tpu.matmul %3, %4, %cst {dimension_numbers = #tpu.dot_dimension_numbers<[1], [1], [0], [0], [0, 0, 1, 0], [], []>} : vector<8x32xf32>, vector<128x32xf32>, vector<8x128xf32> -> vector<8x128xf32>
    %c0_4 = arith.constant 0 : index
    %c0_5 = arith.constant 0 : index
    %6 = vector.load %arg4[%c0_4, %c0_5] : memref<1x128xf32, #tpu.memory_space<vmem>>, vector<1x128xf32>
    %cst_6 = arith.constant 5.000000e-01 : f32
    %7 = vector.broadcast %cst_6 : f32 to vector<1x128xf32>
    %8 = arith.mulf %6, %7 : vector<1x128xf32>
    %9 = vector.broadcast %8 : vector<1x128xf32> to vector<8x128xf32>
    %10 = arith.addf %5, %9 : vector<8x128xf32>
    %c0_7 = arith.constant 0 : index
    %c0_8 = arith.constant 0 : index
    %11 = vector.load %arg5[%c0_7, %c0_8] : memref<8x128xf32, #tpu.memory_space<vmem>>, vector<8x128xf32>
    tpu.vector_store %arg5[%c0_7, %c0_8], %10 {strides = array<i32>} : memref<8x128xf32, #tpu.memory_space<vmem>>, vector<8x128xf32>,
    return
  }
  func.func @transform_0(%arg0: i32, %arg1: i32) -> (i32, i32) {
    %c0_i32 = arith.constant 0 : i32
    %c0_i32_0 = arith.constant 0 : i32
    return %arg0, %c0_i32 : i32, i32
  }
  func.func @transform_1(%arg0: i32, %arg1: i32) -> (i32, i32) {
    %c0_i32 = arith.constant 0 : i32
    %c0_i32_0 = arith.constant 0 : i32
    return %arg1, %c0_i32 : i32, i32
  }
  func.func @transform_2(%arg0: i32, %arg1: i32) -> (i32, i32) {
    %c0_i32 = arith.constant 0 : i32
    %c0_i32_0 = arith.constant 0 : i32
    return %c0_i32, %arg1 : i32, i32
  }
  func.func @transform_3(%arg0: i32, %arg1: i32) -> (i32, i32) {
    %c0_i32 = arith.constant 0 : i32
    return %arg0, %arg1 : i32, i32
  }
}

</mosaic_0001>

<llo_original>
// kernel: tpu_custom_call.1
$region0: #{tpu_custom_call.1}
  #allocation0 [shape = 'u32[]', space=smem, size = 0x4, offset = 0x4, fixed_abs, tag = 'smem constant byte address 0x4 - core index']
  #allocation1 [shape = 'u32[144,128]{1,0:T(1,128)}', space=vmem, size = 0x12000, scoped, tag = 'internal scratch']
  #allocation2 [shape = 'f32[8,32]{1,0:T(8,128)}', space=vmem, size = 0x1000, scoped, tag = 'scratch operand']
  %s0 = inlined_call_operand.hbm [shape: f32[8,32], index: 0, kind: input, shape index: {}]
  %s1 = inlined_call_operand.hbm [shape: f32[16,32], index: 1, kind: input, shape index: {}]
  %s2 = inlined_call_operand.vmem [shape: f32[1,16], index: 2, kind: input, shape index: {}]
  %s3 = inlined_call_operand.hbm [shape: f32[8,16], index: 3, kind: output, shape index: {}]
  %s4 = sld [smem:[#allocation0]]
  $region34: #{tpu_custom_call.1} parent=0
    _
  %s6 = ssub.s32 1, %s4
  %s7 = scalar_select 0, %s6, %s4
  $region1: #{tpu_custom_call.1} parent=0
    #allocation3 [shape = 'u8[4096]{0}', space=vmem, size = 0x1000, scoped, tag = 'input window, operand 0, single buffered']
    #allocation4 [shape = 's32[1]{0}', space=sflag, size = 0x4, scoped, tag = 'scoped memory for tpu_custom_call.1']
    #allocation5 [shape = 's32[1]{0}', space=sflag, size = 0x4, scoped, tag = 'scoped memory for tpu_custom_call.1']
    #allocation6 [shape = 'u8[65536]{0}', space=vmem, size = 0x10000, scoped, tag = 'input window, operand 1, single buffered']
    #allocation7 [shape = 's32[1]{0}', space=sflag, size = 0x4, scoped, tag = 'scoped memory for tpu_custom_call.1']
    #allocation8 [shape = 'u8[4096]{0}', space=vmem, size = 0x1000, scoped, tag = 'output window, operand 0, single buffered']
    %8 = vsyncpa [#allocation4], 0
    %9 = vsyncpa [#allocation7], 0
    %10 = vsyncpa [#allocation5], 0
    // Predicated region
    $region2: #{tpu_custom_call.1} parent=1 // pred_check
      _
    $region3: #{tpu_custom_call.1} parent=1 // pred_check_branch
      %12 = sbr.rel (0) target = $region5
    $region4: #{tpu_custom_call.1} parent=1 // pred_region
      %s14 = ssub.s32 128, 128
      %15 = vsyncadd [#allocation4], %s14
      %s17 = sshll.u32 [#allocation3], 4
      %s18 = int_to_ptr.vmem [resolvable:$true] %s17
      %20 = dma.hbm_to_vmem [thread:$0]  %s0, 128, %s18, [#allocation4]
    $region5: #{tpu_custom_call.1} parent=1 // pred_fallthru
      _
    // Predicated region
    $region6: #{tpu_custom_call.1} parent=1 // pred_check
      _
    $region7: #{tpu_custom_call.1} parent=1 // pred_check_branch
      %22 = sbr.rel (0) target = $region9
    $region8: #{tpu_custom_call.1} parent=1 // pred_region
      %s24 = ssub.s32 2048, 256
      %25 = vsyncadd [#allocation7], %s24
      %s26 = sshll.u32 [#allocation6], 4
      %s27 = int_to_ptr.vmem [resolvable:$true] %s26
      %32 = dma.hbm_to_vmem [thread:$0]  %s1, 256, %s27, [#allocation7], 128, 128, 8
    $region9: #{tpu_custom_call.1} parent=1 // pred_fallthru
      _
    // Predicated region
    $region10: #{tpu_custom_call.1} parent=1 // pred_check
      _
    $region11: #{tpu_custom_call.1} parent=1 // pred_check_branch
      %34 = sbr.rel (0) target = $region13
    $region12: #{tpu_custom_call.1} parent=1 // pred_region
      _
    $region13: #{tpu_custom_call.1} parent=1 // pred_fallthru
      _
    // Predicated region
    $region14: #{tpu_custom_call.1} parent=1 // pred_check
      _
    $region15: #{tpu_custom_call.1} parent=1 // pred_check_branch
      %36 = sbr.rel (0) target = $region17
    $region16: #{tpu_custom_call.1} parent=1 // pred_region
      %37 = dma.done [#allocation4], 128
    $region17: #{tpu_custom_call.1} parent=1 // pred_fallthru
      _
    // Predicated region
    $region18: #{tpu_custom_call.1} parent=1 // pred_check
      _
    $region19: #{tpu_custom_call.1} parent=1 // pred_check_branch
      %39 = sbr.rel (0) target = $region21
    $region20: #{tpu_custom_call.1} parent=1 // pred_region
      %40 = dma.done [#allocation7], 2048
    $region21: #{tpu_custom_call.1} parent=1 // pred_fallthru
      _
    %p41 = scmp.eq.s32.totalorder 0, 0
    // Predicated region
    $region22: #{tpu_custom_call.1} parent=1 // pred_check
      %p42 = pneg %p41
    $region23: #{tpu_custom_call.1} parent=1 // pred_check_branch
      %44 = sbr.rel (%p42) target = $region25
    $region24: #{tpu_custom_call.1} parent=1 // pred_region
      %v45 = vld [vmem:[#allocation3] sm:$0xff]
      %v46 = vmul.f32 %v45, %v45
      %vm47 = vcmask 261120
      %v48 = vsel %vm47, %v46, 0.0
      %49 = vadd.xlane.f32.xlu0 %v48
      %v50 = vpop.xlane.xlu0 %49
      %v51 = vmax.f32 %v50, 1e-24
      %v52 = vrsqrt.pop %v51
      %v53 = vmul.f32 %v52, 0.5
      %v54 = vmul.f32 %v45, %v53
      %55 = vst.msk [vmem:[#allocation2] sm:$0xff] %vm47, %v54
    $region25: #{tpu_custom_call.1} parent=1 // pred_fallthru
      _
    %v56 = vld [vmem:[#allocation2] sm:$0xff]
    %v57 = vld [vmem:[#allocation6] sm:$0xff]
    %v58 = vld [vmem:[#allocation6 + $0x8] sm:$0xff]
    %v59 = vld [vmem:[#allocation6 + $0x10] sm:$0xff]
    %v60 = vld [vmem:[#allocation6 + $0x18] sm:$0xff]
    %v61 = vld [vmem:[#allocation6 + $0x20] sm:$0xff]
    %v62 = vld [vmem:[#allocation6 + $0x28] sm:$0xff]
    %v63 = vld [vmem:[#allocation6 + $0x30] sm:$0xff]
    %v64 = vld [vmem:[#allocation6 + $0x38] sm:$0xff]
    %v65 = vld [vmem:[#allocation6 + $0x40] sm:$0xff]
    %v66 = vld [vmem:[#allocation6 + $0x48] sm:$0xff]
    %v67 = vld [vmem:[#allocation6 + $0x50] sm:$0xff]
    %v68 = vld [vmem:[#allocation6 + $0x58] sm:$0xff]
    %v69 = vld [vmem:[#allocation6 + $0x60] sm:$0xff]
    %v70 = vld [vmem:[#allocation6 + $0x68] sm:$0xff]
    %v71 = vld [vmem:[#allocation6 + $0x70] sm:$0xff]
    %v72 = vld [vmem:[#allocation6 + $0x78] sm:$0xff]
    %v73 = vld [vmem:[%s2] sm:$0x1]
    %v74 = vmul.f32 %v73, 0.5
    %v76 = vlaneseq
    %v77 = vshrl.u32 %v76, 7
    %v78 = vsub.s32 0, %v77
    %v79 = vrot.slane %v74, %v78
    %vm81 = vcmask 261120
    %v83 = vsel %vm81, %v56, 0
    %v86 = vsel %vm81, %v57, 0
    %v89 = vsel %vm81, %v58, 0
    %v92 = vsel %vm81, %v59, 0
    %v95 = vsel %vm81, %v60, 0
    %v98 = vsel %vm81, %v61, 0
    %v101 = vsel %vm81, %v62, 0
    %v104 = vsel %vm81, %v63, 0
    %v107 = vsel %vm81, %v64, 0
    %v110 = vsel %vm81, %v65, 0
    %v113 = vsel %vm81, %v66, 0
    %v116 = vsel %vm81, %v67, 0
    %v119 = vsel %vm81, %v68, 0
    %v122 = vsel %vm81, %v69, 0
    %v125 = vsel %vm81, %v70, 0
    %v128 = vsel %vm81, %v71, 0
    %v131 = vsel %vm81, %v72, 0
    %133 = vmatprep.subr.mxu0 0.0
    %134 = vmatpush1.xpose.msra.mxu0 %v86
    %135 = vmatprep.subr.mxu0 0.0
    %136 = vmatpush1.xpose.msra.mxu0 %v89
    %137 = vmatprep.subr.mxu0 0.0
    %138 = vmatpush1.xpose.msra.mxu0 %v92
    %139 = vmatprep.subr.mxu0 0.0
    %140 = vmatpush1.xpose.msra.mxu0 %v95
    %141 = vmatprep.subr.mxu0 0.0
    %142 = vmatpush1.xpose.msra.mxu0 %v98
    %143 = vmatprep.subr.mxu0 0.0
    %144 = vmatpush1.xpose.msra.mxu0 %v101
    %145 = vmatprep.subr.mxu0 0.0
    %146 = vmatpush1.xpose.msra.mxu0 %v104
    %147 = vmatprep.subr.mxu0 0.0
    %148 = vmatpush1.xpose.msra.mxu0 %v107
    %149 = vmatprep.subr.mxu0 0.0
    %150 = vmatpush1.xpose.msra.mxu0 %v110
    %151 = vmatprep.subr.mxu0 0.0
    %152 = vmatpush1.xpose.msra.mxu0 %v113
    %153 = vmatprep.subr.mxu0 0.0
    %154 = vmatpush1.xpose.msra.mxu0 %v116
    %155 = vmatprep.subr.mxu0 0.0
    %156 = vmatpush1.xpose.msra.mxu0 %v119
    %157 = vmatprep.subr.mxu0 0.0
    %158 = vmatpush1.xpose.msra.mxu0 %v122
    %159 = vmatprep.subr.mxu0 0.0
    %160 = vmatpush1.xpose.msra.mxu0 %v125
    %161 = vmatprep.subr.mxu0 0.0
    %162 = vmatpush1.xpose.msra.mxu0 %v128
    %163 = vmatprep.subr.mxu0 0.0
    %164 = vmatpush1.xpose.msra.mxu0 %v131
    %165 = vmatprep.subr.mxu0 0.0
    %166 = vmatpush1.xpose.msra.mxu0 0.0
    %167 = vmatprep.subr.mxu0 0.0
    %168 = vmatpush1.xpose.msra.mxu0 0.0
    %169 = vmatprep.subr.mxu0 0.0
    %170 = vmatpush1.xpose.msra.mxu0 0.0
    %171 = vmatprep.subr.mxu0 0.0
    %172 = vmatpush1.xpose.msra.mxu0 0.0
    %173 = vmatprep.subr.mxu0 0.0
    %174 = vmatpush1.xpose.msra.mxu0 0.0
    %175 = vmatprep.subr.mxu0 0.0
    %176 = vmatpush1.xpose.msra.mxu0 0.0
    %177 = vmatprep.subr.mxu0 0.0
    %178 = vmatpush1.xpose.msra.mxu0 0.0
    %179 = vmatprep.subr.mxu0 0.0
    %180 = vmatpush1.xpose.msra.mxu0 0.0
    %181 = vmatprep.subr.mxu0 0.0
    %182 = vmatpush1.xpose.msra.mxu0 0.0
    %183 = vmatprep.subr.mxu0 0.0
    %184 = vmatpush1.xpose.msra.mxu0 0.0
    %185 = vmatprep.subr.mxu0 0.0
    %186 = vmatpush1.xpose.msra.mxu0 0.0
    %187 = vmatprep.subr.mxu0 0.0
    %188 = vmatpush1.xpose.msra.mxu0 0.0
    %189 = vmatprep.subr.mxu0 0.0
    %190 = vmatpush1.xpose.msra.mxu0 0.0
    %191 = vmatprep.subr.mxu0 0.0
    %192 = vmatpush1.xpose.msra.mxu0 0.0
    %193 = vmatprep.subr.mxu0 0.0
    %194 = vmatpush1.xpose.msra.mxu0 0.0
    %195 = vmatprep.subr.mxu0 0.0
    %196 = vmatpush1.xpose.msra.mxu0 0.0
    %197 = vmatprep.mubr.f32.mxu0 0.0
    %198 = vmatmul.mubr.f32.gmra.mrb[0].mxu0 %v83
    %v199 = vpop.f32.mrb[0].mxu0
    %v200 = vadd.f32 %v79, %v199
    %v201 = vpop.f32.mrb[0].mxu0
    %202 = vdwg.mxu0
    %203 = vst [vmem:[#allocation8] sm:$0xff] %v200
    // Predicated region
    $region26: #{tpu_custom_call.1} parent=1 // pred_check
      _
    $region27: #{tpu_custom_call.1} parent=1 // pred_check_branch
      %205 = sbr.rel (0) target = $region29
    $region28: #{tpu_custom_call.1} parent=1 // pred_region
      %s207 = ssub.s32 128, 128
      %208 = vsyncadd [#allocation5], %s207
      %s210 = sshll.u32 [#allocation8], 4
      %s211 = int_to_ptr.vmem [resolvable:$true] %s210
      %213 = dma.vmem_to_hbm [thread:$0]  %s211, 128, %s3, [#allocation5]
    $region29: #{tpu_custom_call.1} parent=1 // pred_fallthru
      _
    // Predicated region
    $region30: #{tpu_custom_call.1} parent=1 // pred_check
      _
    $region31: #{tpu_custom_call.1} parent=1 // pred_check_branch
      %215 = sbr.rel (0) target = $region33
    $region32: #{tpu_custom_call.1} parent=1 // pred_region
      %216 = dma.done [#allocation5], 128
    $region33: #{tpu_custom_call.1} parent=1 // pred_fallthru
      _
    %217 = vsyncpa [#allocation4], 1
    %218 = vsyncpa [#allocation7], 1
    %219 = vsyncpa [#allocation5], 1

</llo_original>
